<compile_context>
chip_gen: v7x
topology: tpu7x:2x2x1
jax: 0.10.0
libtpu: 0.0.40
codegen_flags: <defaults>
</compile_context>

<pallas_src>
import functools

import jax
import jax.numpy as jnp
from jax.experimental import pallas as pl
from jax.experimental.pallas import tpu as pltpu


def _halfwindow_kernel(y_ref, yhat_ref, out_ref, acc_ref, min_ref, max_ref, sum_ref):
    """Streaming half-window kernel (window_size == 2*step, step % 8 == 0).

    grid = (lane_blocks [parallel], half_windows [arbitrary]).
    Each step sees one (step, lane_block) half-window tile; the previous half's
    min/max/sum are carried in VMEM scratch and combined to form each window.
    """
    h = pl.program_id(1)

    y = y_ref[...].astype(jnp.float32)                      # (step, LB)
    d = jnp.abs(y - yhat_ref[...].astype(jnp.float32))      # (step, LB)

    hmin = jnp.min(y, axis=0, keepdims=True)                # (1, LB)
    hmax = jnp.max(y, axis=0, keepdims=True)                # (1, LB)
    hsum = jnp.sum(d, axis=0, keepdims=True)                # (1, LB)

    @pl.when(h == 0)
    def _init():
        acc_ref[...] = jnp.zeros_like(acc_ref)

    @pl.when(h > 0)
    def _combine():
        wmin = jnp.minimum(min_ref[...], hmin)
        wmax = jnp.maximum(max_ref[...], hmax)
        wsum = sum_ref[...] + hsum
        wrange = wmax - wmin + 1e-5                         # > 0, no abs needed
        # single divide on the reduced (1, LB) tile (instead of W full-tile divides)
        acc_ref[...] += wsum / wrange

    # stash current half-window stats for the next grid step
    min_ref[...] = hmin
    max_ref[...] = hmax
    sum_ref[...] = hsum

    @pl.when(h == pl.num_programs(1) - 1)
    def _finalize():
        out_ref[...] = acc_ref[...]


def _unfolded_window_kernel(y_ref, yhat_ref, out_ref, acc_ref):
    """Fallback for configs that don't tile cleanly (odd window / step % 8 != 0).

    Windows are materialized by the wrapper (XLA gather) into (nw, W, lanes);
    each grid step reduces one full window block (all block dims are full-extent,
    so no (8,128) alignment issues).
    """
    w = pl.program_id(1)

    @pl.when(w == 0)
    def _init():
        acc_ref[...] = jnp.zeros_like(acc_ref)

    y = y_ref[0].astype(jnp.float32)                        # (W, LB)
    d = jnp.abs(y - yhat_ref[0].astype(jnp.float32))
    wmin = jnp.min(y, axis=0, keepdims=True)
    wmax = jnp.max(y, axis=0, keepdims=True)
    wsum = jnp.sum(d, axis=0, keepdims=True)
    acc_ref[...] += wsum / (wmax - wmin + 1e-5)

    @pl.when(w == pl.num_programs(1) - 1)
    def _finalize():
        out_ref[...] = acc_ref[...]


def _pick_lane_block(lanes: int) -> int:
    # Prefer >=2 lane blocks (parallel axis for v7x dual TC) with a reasonably
    # large block; lanes is always a multiple of 128.
    for cand in (512, 256):
        if lanes % cand == 0 and lanes // cand >= 2:
            return cand
    return 128


@functools.partial(
    jax.jit,
    static_argnames=("sample_frq", "window_size_s", "return_average_per_feature", "future_len_s"),
)
def relative_mae_metric(
    y,
    y_hat,
    sample_frq: float,
    window_size_s: int = 30,
    return_average_per_feature: bool = False,
    future_len_s: int = 0,
):
    assert y.ndim == 3, str(y.shape)
    assert sample_frq > 0
    window_size = int(window_size_s * sample_frq)
    if window_size > y.shape[1]:
        raise Exception(
            f"y.shape {y.shape} window_size {window_size} > y.shape[1] {y.shape[1]} "
            f"window_size_s {window_size_s} sample_frq {sample_frq}"
        )
    if int(future_len_s * sample_frq) > 0:
        # TODO(synk): future_len_s > 0 branch uses torch.max(dim=(0,1,3)) which is
        # invalid even in PyTorch; only the default (future_len_s == 0) path is implemented.
        raise NotImplementedError("future_len_s > 0 path is not implemented")

    step = window_size // 2
    assert step >= 1, f"window_size {window_size} too small"
    B, T, F = y.shape
    num_windows = (T - window_size) // step + 1

    # --- lane-dense relayout: time on sublanes, (batch*feature) on lanes ---
    lanes0 = B * F
    lanes = pl.cdiv(lanes0, 128) * 128
    lane_block = _pick_lane_block(lanes)
    num_lane_blocks = lanes // lane_block

    def relayout(a):
        a2 = jnp.transpose(a, (1, 0, 2)).reshape(T, lanes0)
        if lanes != lanes0:
            # zero padding contributes 0 to every per-lane sum (|0-0| / 1e-5 == 0)
            a2 = jnp.pad(a2, ((0, 0), (0, lanes - lanes0)))
        return a2

    y2 = relayout(y)
    yh2 = relayout(y_hat)

    fast = (window_size == 2 * step) and (step % 8 == 0)

    if fast:
        num_half = num_windows + 1  # == T // step; all blocks fully in-bounds
        per_lane = pl.pallas_call(
            _halfwindow_kernel,
            out_shape=jax.ShapeDtypeStruct((1, lanes), jnp.float32),
            grid_spec=pltpu.PrefetchScalarGridSpec(
                num_scalar_prefetch=0,
                grid=(num_lane_blocks, num_half),
                in_specs=[
                    pl.BlockSpec((step, lane_block), lambda j, h: (h, j)),
                    pl.BlockSpec((step, lane_block), lambda j, h: (h, j)),
                ],
                out_specs=pl.BlockSpec((1, lane_block), lambda j, h: (0, j)),
                scratch_shapes=[
                    pltpu.VMEM((1, lane_block), jnp.float32) for _ in range(4)
                ],
            ),
            compiler_params=pltpu.CompilerParams(
                dimension_semantics=("parallel", "arbitrary")
            ),
        )(y2, yh2)
    else:
        # materialize the unfold in XLA (robust for unaligned configs; ~2x traffic)
        idx = jnp.arange(num_windows)[:, None] * step + jnp.arange(window_size)[None, :]
        yu = y2[idx]    # (nw, W, lanes)
        yhu = yh2[idx]  # (nw, W, lanes)
        per_lane = pl.pallas_call(
            _unfolded_window_kernel,
            out_shape=jax.ShapeDtypeStruct((1, lanes), jnp.float32),
            grid_spec=pltpu.PrefetchScalarGridSpec(
                num_scalar_prefetch=0,
                grid=(num_lane_blocks, num_windows),
                in_specs=[
                    pl.BlockSpec((1, window_size, lane_block), lambda j, w: (w, 0, j)),
                    pl.BlockSpec((1, window_size, lane_block), lambda j, w: (w, 0, j)),
                ],
                out_specs=pl.BlockSpec((1, lane_block), lambda j, w: (0, j)),
                scratch_shapes=[pltpu.VMEM((1, lane_block), jnp.float32)],
            ),
            compiler_params=pltpu.CompilerParams(
                dimension_semantics=("parallel", "arbitrary")
            ),
        )(yu, yhu)

    # epilogue: fold lanes back into (B, F) and normalize
    per_bf = per_lane[0, :lanes0].reshape(B, F)
    if return_average_per_feature:
        # mean over (batch, window index, within-window) per feature -> (F,)
        return jnp.sum(per_bf, axis=0) / (B * num_windows * window_size)
    # global mean -> scalar
    return jnp.sum(per_bf) / (B * num_windows * F * window_size)


class RelativeMAELoss:
    """JAX/Pallas equivalent of the PyTorch RelativeMAELoss module (no parameters)."""

    def __init__(self, **kwargs):
        self.kwargs = kwargs

    def __call__(self, y, y_hat):
        return relative_mae_metric(y, y_hat, **self.kwargs)


def _check(y, y_hat, sample_frq, window_size_s):
    """Pure-JAX reference reproducing torch.unfold semantics + both output modes."""
    window_size = int(window_size_s * sample_frq)
    step = window_size // 2
    B, T, F = y.shape
    nw = (T - window_size) // step + 1
    idx = jnp.arange(nw)[:, None] * step + jnp.arange(window_size)[None, :]  # (nw, W)
    uy = y[:, idx, :]                     # (B, nw, W, F)
    ud = (y - y_hat)[:, idx, :]           # (B, nw, W, F)
    rng = uy.max(axis=2) - uy.min(axis=2) + 1e-5          # (B, nw, F)
    rel = jnp.abs(ud) / rng[:, :, None, :]                # (B, nw, W, F)

    out = jax.block_until_ready(
        relative_mae_metric(y, y_hat, sample_frq=sample_frq, window_size_s=window_size_s)
    )
    assert out.shape == (), out.shape
    assert jnp.allclose(out, rel.mean(), rtol=1e-5, atol=1e-6), (out, rel.mean())

    out_pf = jax.block_until_ready(
        relative_mae_metric(
            y, y_hat, sample_frq=sample_frq, window_size_s=window_size_s,
            return_average_per_feature=True,
        )
    )
    ref_pf = rel.mean(axis=(0, 1, 2))
    assert out_pf.shape == (F,), out_pf.shape
    assert jnp.allclose(out_pf, ref_pf, rtol=1e-5, atol=1e-6), (out_pf, ref_pf)


if __name__ == "__main__":
    B, T, F = 2, 64, 4
    sample_frq = 0.5

    key = jax.random.PRNGKey(0)
    k1, k2 = jax.random.split(key)
    y = jax.random.normal(k1, (B, T, F), dtype=jnp.float32)
    y_hat = y + 0.1 * jax.random.normal(k2, (B, T, F), dtype=jnp.float32)

    # Primary run through the module wrapper (fast half-window streaming path:
    # window_size = 16, step = 8, num_windows = 7).
    loss_fn = RelativeMAELoss(sample_frq=sample_frq, window_size_s=32)
    out = jax.block_until_ready(loss_fn(y, y_hat))
    assert out.shape == (), out.shape

    # Fast path: window_size = 16, step = 8  -> half-window streaming kernel.
    _check(y, y_hat, sample_frq=sample_frq, window_size_s=32)
    # Fallback path: window_size = 15, step = 7 -> unfolded-window kernel.
    _check(y, y_hat, sample_frq=sample_frq, window_size_s=30)

    print("KERNEL_OK")
</pallas_src>

<mosaic_0001>
module attributes {stable_mosaic.version = 11 : i64} {
  func.func @_halfwindow_kernel(%arg0: i32, %arg1: i32, %arg2: memref<8x128xf32, #tpu.memory_space<vmem>>, %arg3: memref<8x128xf32, #tpu.memory_space<vmem>>, %arg4: memref<1x128xf32, #tpu.memory_space<vmem>>, %arg5: memref<1x128xf32, #tpu.memory_space<vmem>>, %arg6: memref<1x128xf32, #tpu.memory_space<vmem>>, %arg7: memref<1x128xf32, #tpu.memory_space<vmem>>, %arg8: memref<1x128xf32, #tpu.memory_space<vmem>>) attributes {dimension_semantics = [#tpu.dimension_semantics<parallel>, #tpu.dimension_semantics<arbitrary>], iteration_bounds = array<i64: 1, 8>, scalar_prefetch = 0 : i64, scratch_operands = 4 : i64, tpu.core_type = #tpu.core_type<tc>, window_params = [{transform_indices = @transform_0, window_bounds = array<i64: 8, 128>}, {transform_indices = @transform_1, window_bounds = array<i64: 8, 128>}, {transform_indices = @transform_2, window_bounds = array<i64: 1, 128>}]} {
    %c0 = arith.constant 0 : index
    %c0_0 = arith.constant 0 : index
    %0 = vector.load %arg2[%c0, %c0_0] : memref<8x128xf32, #tpu.memory_space<vmem>>, vector<8x128xf32>
    %c0_1 = arith.constant 0 : index
    %c0_2 = arith.constant 0 : index
    %1 = vector.load %arg3[%c0_1, %c0_2] : memref<8x128xf32, #tpu.memory_space<vmem>>, vector<8x128xf32>
    %2 = arith.subf %0, %1 : vector<8x128xf32>
    %3 = math.absf %2 : vector<8x128xf32>
    %cst = arith.constant dense<0x7F800000> : vector<128xf32>
    %4 = vector.multi_reduction <minimumf>, %0, %cst [0] : vector<8x128xf32> to vector<128xf32>
    %5 = vector.shape_cast %4 : vector<128xf32> to vector<1x128xf32>
    %cst_3 = arith.constant dense<0xFF800000> : vector<128xf32>
    %6 = vector.multi_reduction <maximumf>, %0, %cst_3 [0] : vector<8x128xf32> to vector<128xf32>
    %7 = vector.shape_cast %6 : vector<128xf32> to vector<1x128xf32>
    %cst_4 = arith.constant dense<0.000000e+00> : vector<128xf32>
    %8 = vector.multi_reduction <add>, %3, %cst_4 [0] : vector<8x128xf32> to vector<128xf32>
    %9 = vector.shape_cast %8 : vector<128xf32> to vector<1x128xf32>
    %c0_i32 = arith.constant 0 : i32
    %10 = arith.cmpi eq, %arg1, %c0_i32 : i32
    %11 = arith.extui %10 : i1 to i32
    %c0_i32_5 = arith.constant 0 : i32
    %12 = arith.cmpi ne, %11, %c0_i32_5 : i32
    scf.if %12 {
      %cst_15 = arith.constant 0.000000e+00 : f32
      %22 = vector.broadcast %cst_15 : f32 to vector<1x128xf32>
      %c0_16 = arith.constant 0 : index
      %c0_17 = arith.constant 0 : index
      %23 = vector.load %arg5[%c0_16, %c0_17] : memref<1x128xf32, #tpu.memory_space<vmem>>, vector<1x128xf32>
      tpu.vector_store %arg5[%c0_16, %c0_17], %22 {strides = array<i32>} : memref<1x128xf32, #tpu.memory_space<vmem>>, vector<1x128xf32>,
    } else {
    }
    %c0_i32_6 = arith.constant 0 : i32
    %13 = arith.cmpi sgt, %arg1, %c0_i32_6 : i32
    %14 = arith.extui %13 : i1 to i32
    %c0_i32_7 = arith.constant 0 : i32
    %15 = arith.cmpi ne, %14, %c0_i32_7 : i32
    scf.if %15 {
      %c0_15 = arith.constant 0 : index
      %c0_16 = arith.constant 0 : index
      %22 = vector.load %arg6[%c0_15, %c0_16] : memref<1x128xf32, #tpu.memory_space<vmem>>, vector<1x128xf32>
      %23 = arith.minimumf %22, %5 : vector<1x128xf32>
      %c0_17 = arith.constant 0 : index
      %c0_18 = arith.constant 0 : index
      %24 = vector.load %arg7[%c0_17, %c0_18] : memref<1x128xf32, #tpu.memory_space<vmem>>, vector<1x128xf32>
      %25 = arith.maximumf %24, %7 : vector<1x128xf32>
      %c0_19 = arith.constant 0 : index
      %c0_20 = arith.constant 0 : index
      %26 = vector.load %arg8[%c0_19, %c0_20] : memref<1x128xf32, #tpu.memory_space<vmem>>, vector<1x128xf32>
      %27 = arith.addf %26, %9 : vector<1x128xf32>
      %28 = arith.subf %25, %23 : vector<1x128xf32>
      %cst_21 = arith.constant 9.99999974E-6 : f32
      %29 = vector.broadcast %cst_21 : f32 to vector<1x128xf32>
      %30 = arith.addf %28, %29 : vector<1x128xf32>
      %c0_22 = arith.constant 0 : index
      %c0_23 = arith.constant 0 : index
      %31 = vector.load %arg5[%c0_22, %c0_23] : memref<1x128xf32, #tpu.memory_space<vmem>>, vector<1x128xf32>
      %32 = arith.divf %27, %30 : vector<1x128xf32>
      %33 = arith.addf %31, %32 : vector<1x128xf32>
      %c0_24 = arith.constant 0 : index
      %c0_25 = arith.constant 0 : index
      %34 = vector.load %arg5[%c0_24, %c0_25] : memref<1x128xf32, #tpu.memory_space<vmem>>, vector<1x128xf32>
      tpu.vector_store %arg5[%c0_24, %c0_25], %33 {strides = array<i32>} : memref<1x128xf32, #tpu.memory_space<vmem>>, vector<1x128xf32>,
    } else {
    }
    %c0_8 = arith.constant 0 : index
    %c0_9 = arith.constant 0 : index
    %16 = vector.load %arg6[%c0_8, %c0_9] : memref<1x128xf32, #tpu.memory_space<vmem>>, vector<1x128xf32>
    tpu.vector_store %arg6[%c0_8, %c0_9], %5 {strides = array<i32>} : memref<1x128xf32, #tpu.memory_space<vmem>>, vector<1x128xf32>,
    %c0_10 = arith.constant 0 : index
    %c0_11 = arith.constant 0 : index
    %17 = vector.load %arg7[%c0_10, %c0_11] : memref<1x128xf32, #tpu.memory_space<vmem>>, vector<1x128xf32>
    tpu.vector_store %arg7[%c0_10, %c0_11], %7 {strides = array<i32>} : memref<1x128xf32, #tpu.memory_space<vmem>>, vector<1x128xf32>,
    %c0_12 = arith.constant 0 : index
    %c0_13 = arith.constant 0 : index
    %18 = vector.load %arg8[%c0_12, %c0_13] : memref<1x128xf32, #tpu.memory_space<vmem>>, vector<1x128xf32>
    tpu.vector_store %arg8[%c0_12, %c0_13], %9 {strides = array<i32>} : memref<1x128xf32, #tpu.memory_space<vmem>>, vector<1x128xf32>,
    %c7_i32 = arith.constant 7 : i32
    %19 = arith.cmpi eq, %arg1, %c7_i32 : i32
    %20 = arith.extui %19 : i1 to i32
    %c0_i32_14 = arith.constant 0 : i32
    %21 = arith.cmpi ne, %20, %c0_i32_14 : i32
    scf.if %21 {
      %c0_15 = arith.constant 0 : index
      %c0_16 = arith.constant 0 : index
      %22 = vector.load %arg5[%c0_15, %c0_16] : memref<1x128xf32, #tpu.memory_space<vmem>>, vector<1x128xf32>
      %c0_17 = arith.constant 0 : index
      %c0_18 = arith.constant 0 : index
      %23 = vector.load %arg4[%c0_17, %c0_18] : memref<1x128xf32, #tpu.memory_space<vmem>>, vector<1x128xf32>
      tpu.vector_store %arg4[%c0_17, %c0_18], %22 {strides = array<i32>} : memref<1x128xf32, #tpu.memory_space<vmem>>, vector<1x128xf32>,
    } else {
    }
    return
  }
  func.func @transform_0(%arg0: i32, %arg1: i32) -> (i32, i32) {
    %c0_i32 = arith.constant 0 : i32
    return %arg1, %arg0 : i32, i32
  }
  func.func @transform_1(%arg0: i32, %arg1: i32) -> (i32, i32) {
    %c0_i32 = arith.constant 0 : i32
    return %arg1, %arg0 : i32, i32
  }
  func.func @transform_2(%arg0: i32, %arg1: i32) -> (i32, i32) {
    %c0_i32 = arith.constant 0 : i32
    %c0_i32_0 = arith.constant 0 : i32
    return %c0_i32, %arg0 : i32, i32
  }
}

</mosaic_0001>

<llo_original>
// kernel: relative_mae_metric.1
$region0: #{relative_mae_metric.1}
  #allocation0 [shape = 'u32[]', space=smem, size = 0x4, offset = 0x4, fixed_abs, tag = 'smem constant byte address 0x4 - core index']
  #allocation1 [shape = 'u32[144,128]{1,0:T(1,128)}', space=vmem, size = 0x12000, scoped, tag = 'internal scratch']
  #allocation2 [shape = 'f32[1,128]{1,0:T(1,128)}', space=vmem, size = 0x200, scoped, tag = 'scratch operand']
  #allocation3 [shape = 'f32[1,128]{1,0:T(1,128)}', space=vmem, size = 0x200, scoped, tag = 'scratch operand']
  #allocation4 [shape = 'f32[1,128]{1,0:T(1,128)}', space=vmem, size = 0x200, scoped, tag = 'scratch operand']
  #allocation5 [shape = 'f32[1,128]{1,0:T(1,128)}', space=vmem, size = 0x200, scoped, tag = 'scratch operand']
  %s0 = inlined_call_operand.vmem [shape: f32[64,128], index: 0, kind: input, shape index: {}]
  %s1 = inlined_call_operand.vmem [shape: f32[64,128], index: 1, kind: input, shape index: {}]
  %s2 = inlined_call_operand.vmem [shape: f32[1,128], index: 2, kind: output, shape index: {}]
  %s3 = sld [smem:[#allocation0]]
  $region53: #{relative_mae_metric.1} parent=0
    _
  %s5 = ssub.s32 1, %s3
  %s6 = scalar_select 0, %s5, %s3
  loop: start=0, step=1, limit=10
  $region2: #{relative_mae_metric.1} parent=0 // loop_pre_header
    _
  $region3: #{relative_mae_metric.1} parent=0 // loop_header
    %s8 = sphi 0, %s12
    %p9 = scmp.ge.s32.totalorder %s8, 10
    %s15 = sphi 0, %s27
    %s16 = sphi 0, %s23
    %s17 = sphi 0, %s15
    %s18 = sphi 0, %s16
    %s19 = sphi 0, %s17
    %s20 = sphi 0, %s18
    %s32 = sphi 0, %s34
    %s35 = sphi 0, %s32
    %s36 = sphi 0, %s35
    %s52 = sphi 0, %s36
    %s60 = sphi 0, %s62
    %s63 = sphi 0, %s60
    %s64 = sphi 0, %s63
    %s80 = sphi 0, %s64
    %s86 = sphi 0, %s88
    %s89 = sphi 0, %s86
    %s90 = sphi 0, %s89
    %s106 = sphi 0, %s90
  $region4: #{relative_mae_metric.1} parent=0 // loop_header_branch
    %11 = sbr.rel (%p9) target = $region8
  $region5: #{relative_mae_metric.1} parent=0 // loop_body
    %s13 = ssub.s32 %s8, 1
    %s14 = ssub.s32 %s8, 2
    %s21 = sadd.s32 1, %s16
    %p22 = scmp.ge.s32.totalorder %s21, 8
    %s23 = scalar_select %p22, 0, %s21
    %s24 = sadd.s32 1, %s15
    %s25 = scalar_select %p22, %s24, %s15
    %p26 = scmp.ge.s32.totalorder %s25, 1
    %s27 = scalar_select %p26, 0, %s25
    %s28 = ssub.s32 %s16, %s23
    %s29 = ssub.s32 %s15, %s27
    %s30 = sor.u32 %s28, %s29
    %p31 = scmp.eq.s32.totalorder %s30, 0
    %s33 = sadd.s32 %s32, 1
    %s34 = scalar_select %p31, %s32, %s33
    %p37 = pneg %p31
    %p38 = scmp.eq.s32.totalorder %s8, 7
    %p39 = por %p37, %p38
    %p40 = scmp.ne.s32.totalorder %s32, %s35
    %p41 = scmp.eq.s32.totalorder %s8, 0
    %p42 = por %p40, %p41
    %p43 = scmp.ne.s32.totalorder %s32, %s35
    %p44 = scmp.eq.s32.totalorder %s13, 7
    %p45 = por %p43, %p44
    %p46 = scmp.ne.s32.totalorder %s35, %s36
    %p47 = scmp.eq.s32.totalorder %s13, 0
    %p48 = por %p46, %p47
    %p49 = scmp.ne.s32.totalorder %s35, %s36
    %p50 = scmp.eq.s32.totalorder %s14, 7
    %p51 = por %p49, %p50
    %p53 = scmp.ne.s32.totalorder %s36, %s52
    %p54 = scmp.eq.s32.totalorder %s14, 0
    %p55 = por %p53, %p54
    %s56 = ssub.s32 %s16, %s23
    %s57 = ssub.s32 %s15, %s27
    %s58 = sor.u32 %s56, %s57
    %p59 = scmp.eq.s32.totalorder %s58, 0
    %s61 = sadd.s32 %s60, 1
    %s62 = scalar_select %p59, %s60, %s61
    %p65 = pneg %p59
    %p66 = scmp.eq.s32.totalorder %s8, 7
    %p67 = por %p65, %p66
    %p68 = scmp.ne.s32.totalorder %s60, %s63
    %p69 = scmp.eq.s32.totalorder %s8, 0
    %p70 = por %p68, %p69
    %p71 = scmp.ne.s32.totalorder %s60, %s63
    %p72 = scmp.eq.s32.totalorder %s13, 7
    %p73 = por %p71, %p72
    %p74 = scmp.ne.s32.totalorder %s63, %s64
    %p75 = scmp.eq.s32.totalorder %s13, 0
    %p76 = por %p74, %p75
    %p77 = scmp.ne.s32.totalorder %s63, %s64
    %p78 = scmp.eq.s32.totalorder %s14, 7
    %p79 = por %p77, %p78
    %p81 = scmp.ne.s32.totalorder %s64, %s80
    %p82 = scmp.eq.s32.totalorder %s14, 0
    %p83 = por %p81, %p82
    %s84 = ssub.s32 %s15, %s27
    %p85 = scmp.eq.s32.totalorder %s84, 0
    %s87 = sadd.s32 %s86, 1
    %s88 = scalar_select %p85, %s86, %s87
    %p91 = pneg %p85
    %p92 = scmp.eq.s32.totalorder %s8, 7
    %p93 = por %p91, %p92
    %p94 = scmp.ne.s32.totalorder %s86, %s89
    %p95 = scmp.eq.s32.totalorder %s8, 0
    %p96 = por %p94, %p95
    %p97 = scmp.ne.s32.totalorder %s86, %s89
    %p98 = scmp.eq.s32.totalorder %s13, 7
    %p99 = por %p97, %p98
    %p100 = scmp.ne.s32.totalorder %s89, %s90
    %p101 = scmp.eq.s32.totalorder %s13, 0
    %p102 = por %p100, %p101
    %p103 = scmp.ne.s32.totalorder %s89, %s90
    %p104 = scmp.eq.s32.totalorder %s14, 7
    %p105 = por %p103, %p104
    %p107 = scmp.ne.s32.totalorder %s90, %s106
    %p108 = scmp.eq.s32.totalorder %s14, 0
    %p109 = por %p107, %p108
    %p110 = scmp.le.s32.totalorder 1, %s8
    %p111 = scmp.lt.s32.totalorder %s8, 9
    %p112 = pnand %p110, %p111
    %p113 = pneg %p112
    // Predicated region
    $region9: #{relative_mae_metric.1} parent=5 // pred_check
      _
    $region10: #{relative_mae_metric.1} parent=5 // pred_check_branch
      %115 = sbr.rel (%p112) target = $region12
    $region11: #{relative_mae_metric.1} parent=5 // pred_region
      %s116 = ssub.s32 %s8, 1
    $region12: #{relative_mae_metric.1} parent=5 // pred_fallthru
      _
    %p117 = scmp.lt.s32.totalorder %s8, 8
    // Predicated region
    $region13: #{relative_mae_metric.1} parent=5 // pred_check
      %p118 = pneg %p117
    $region14: #{relative_mae_metric.1} parent=5 // pred_check_branch
      %120 = sbr.rel (%p118) target = $region16
    $region15: #{relative_mae_metric.1} parent=5 // pred_region
      // Predicated region
      $region17: #{relative_mae_metric.1} parent=15 // pred_check
        %p121 = pneg %p42
      $region18: #{relative_mae_metric.1} parent=15 // pred_check_branch
        %123 = sbr.rel (%p121) target = $region20
      $region19: #{relative_mae_metric.1} parent=15 // pred_region
        %p124 = scmp.lt.s32.totalorder %s16, 7
        %s125 = scalar_select %p124, %s16, 7
        %p126 = scmp.lt.s32.totalorder %s15, 0
        %s127 = scalar_select %p126, %s15, 0
        %s128 = sadd.s32 %s127, %s125
        %s129 = smul.addr %s128, 8
        %s130 = scalar_lea.vmem %s0, %s129
      $region20: #{relative_mae_metric.1} parent=15 // pred_fallthru
        _
      // Predicated region
      $region21: #{relative_mae_metric.1} parent=15 // pred_check
        %p131 = pneg %p70
      $region22: #{relative_mae_metric.1} parent=15 // pred_check_branch
        %133 = sbr.rel (%p131) target = $region24
      $region23: #{relative_mae_metric.1} parent=15 // pred_region
        %p134 = scmp.lt.s32.totalorder %s16, 7
        %s135 = scalar_select %p134, %s16, 7
        %p136 = scmp.lt.s32.totalorder %s15, 0
        %s137 = scalar_select %p136, %s15, 0
        %s138 = sadd.s32 %s137, %s135
        %s139 = smul.addr %s138, 8
        %s140 = scalar_lea.vmem %s1, %s139
      $region24: #{relative_mae_metric.1} parent=15 // pred_fallthru
        _
    $region16: #{relative_mae_metric.1} parent=5 // pred_fallthru
      _
    %p141 = scmp.le.s32.totalorder 1, %s8
    %p142 = scmp.lt.s32.totalorder %s8, 9
    %p143 = pnand %p141, %p142
    %p144 = pneg %p143
    // Predicated region
    $region25: #{relative_mae_metric.1} parent=5 // pred_check
      _
    $region26: #{relative_mae_metric.1} parent=5 // pred_check_branch
      %146 = sbr.rel (%p143) target = $region28
    $region27: #{relative_mae_metric.1} parent=5 // pred_region
      %s147 = ssub.s32 %s8, 1
      %p148 = scmp.lt.s32.totalorder %s18, 7
      %s149 = scalar_select %p148, %s18, 7
      %p150 = scmp.lt.s32.totalorder %s17, 0
      %s151 = scalar_select %p150, %s17, 0
      %s152 = sadd.s32 %s151, %s149
      %s153 = smul.addr %s152, 8
      %s154 = scalar_lea.vmem %s0, %s153
      %p155 = pneg %p48
      %p156 = pneg %p45
      %p157 = scmp.lt.s32.totalorder %s18, 7
      %s158 = scalar_select %p157, %s18, 7
      %p159 = scmp.lt.s32.totalorder %s17, 0
      %s160 = scalar_select %p159, %s17, 0
      %s161 = sadd.s32 %s160, %s158
      %s162 = smul.addr %s161, 8
      %s163 = scalar_lea.vmem %s1, %s162
      %p164 = pneg %p76
      %p165 = pneg %p73
      %p166 = pneg %p102
      %p167 = pneg %p99
      %p168 = scmp.lt.s32.totalorder %s17, 0
      %s169 = scalar_select %p168, %s17, 0
      %s170 = scalar_lea.vmem %s2, %s169
      %p171 = scmp.lt.s32.totalorder %s18, 7
      %s172 = scalar_select %p171, %s18, 7
      %p173 = scmp.lt.s32.totalorder %s17, 0
      %s174 = scalar_select %p173, %s17, 0
      %s175 = sadd.s32 %s174, %s172
      %s176 = smul.addr %s175, 8
      %s177 = scalar_lea.vmem %s0, %s176
      %p178 = scmp.lt.s32.totalorder %s18, 7
      %s179 = scalar_select %p178, %s18, 7
      %p180 = scmp.lt.s32.totalorder %s17, 0
      %s181 = scalar_select %p180, %s17, 0
      %s182 = sadd.s32 %s181, %s179
      %s183 = smul.addr %s182, 8
      %s184 = scalar_lea.vmem %s1, %s183
      %p185 = scmp.lt.s32.totalorder %s17, 0
      %s186 = scalar_select %p185, %s17, 0
      %s187 = scalar_lea.vmem %s2, %s186
      %v188 = vld [vmem:[%s177] sm:$0xff]
      %v189 = vld [vmem:[%s184] sm:$0xff]
      %v190 = vsub.f32 %v188, %v189
      %v191 = vand.u32 2147483647, %v190
      %v192 = vrot.slane %v188, 4
      %v193 = vmin.f32 %v188, %v192
      %v194 = vrot.slane %v193, 2
      %v195 = vmin.f32 %v193, %v194
      %v196 = vrot.slane %v195, 1
      %v197 = vmin.f32 %v195, %v196
      %v198 = vrot.slane %v188, 4
      %v199 = vmax.f32 %v188, %v198
      %v200 = vrot.slane %v199, 2
      %v201 = vmax.f32 %v199, %v200
      %v202 = vrot.slane %v201, 1
      %v203 = vmax.f32 %v201, %v202
      %v204 = vrot.slane %v191, 4
      %v205 = vadd.f32 %v191, %v204
      %v206 = vrot.slane %v205, 2
      %v207 = vadd.f32 %v205, %v206
      %v208 = vrot.slane %v207, 1
      %v209 = vadd.f32 %v207, %v208
      %p210 = scmp.eq.s32.totalorder %s18, 0
      // Predicated region
      $region29: #{relative_mae_metric.1} parent=27 // pred_check
        %p211 = pneg %p210
      $region30: #{relative_mae_metric.1} parent=27 // pred_check_branch
        %213 = sbr.rel (%p211) target = $region32
      $region31: #{relative_mae_metric.1} parent=27 // pred_region
        %214 = vst [vmem:[#allocation2] sm:$0x1] 0.0
      $region32: #{relative_mae_metric.1} parent=27 // pred_fallthru
        _
      %p215 = scmp.gt.s32.totalorder %s18, 0
      // Predicated region
      $region33: #{relative_mae_metric.1} parent=27 // pred_check
        %p216 = pneg %p215
      $region34: #{relative_mae_metric.1} parent=27 // pred_check_branch
        %218 = sbr.rel (%p216) target = $region36
      $region35: #{relative_mae_metric.1} parent=27 // pred_region
        %v219 = vld [vmem:[#allocation3] sm:$0x1]
        %v220 = vmin.f32 %v219, %v197
        %v221 = vld [vmem:[#allocation4] sm:$0x1]
        %v222 = vmax.f32 %v221, %v203
        %v223 = vld [vmem:[#allocation5] sm:$0x1]
        %v224 = vadd.f32 %v223, %v209
        %v225 = vsub.f32 %v222, %v220
        %v226 = vadd.f32 %v225, 1e-05
        %v227 = vld [vmem:[#allocation2] sm:$0x1]
        %v228 = vrcp.pop %v226
        %v229 = vmul.f32 %v224, %v228
        %v230 = vadd.f32 %v227, %v229
        %231 = vst [vmem:[#allocation2] sm:$0x1] %v230
      $region36: #{relative_mae_metric.1} parent=27 // pred_fallthru
        _
      %232 = vst [vmem:[#allocation3] sm:$0x1] %v197
      %233 = vst [vmem:[#allocation4] sm:$0x1] %v203
      %234 = vst [vmem:[#allocation5] sm:$0x1] %v209
      %p235 = scmp.eq.s32.totalorder %s18, 7
      // Predicated region
      $region37: #{relative_mae_metric.1} parent=27 // pred_check
        %p236 = pneg %p235
      $region38: #{relative_mae_metric.1} parent=27 // pred_check_branch
        %238 = sbr.rel (%p236) target = $region40
      $region39: #{relative_mae_metric.1} parent=27 // pred_region
        %v239 = vld [vmem:[#allocation2] sm:$0x1]
        %240 = vst [vmem:[%s187] sm:$0x1] %v239
      $region40: #{relative_mae_metric.1} parent=27 // pred_fallthru
        _
      %p241 = scmp.lt.s32.totalorder %s17, 0
      %s242 = scalar_select %p241, %s17, 0
      %s243 = scalar_lea.vmem %s2, %s242
      // Predicated region
      $region41: #{relative_mae_metric.1} parent=27 // pred_check
        %p244 = pneg %p99
      $region42: #{relative_mae_metric.1} parent=27 // pred_check_branch
        %246 = sbr.rel (%p244) target = $region44
      $region43: #{relative_mae_metric.1} parent=27 // pred_region
        _
      $region44: #{relative_mae_metric.1} parent=27 // pred_fallthru
        _
      // Predicated region
      $region45: #{relative_mae_metric.1} parent=27 // pred_check
        %p247 = pneg %p99
      $region46: #{relative_mae_metric.1} parent=27 // pred_check_branch
        %249 = sbr.rel (%p247) target = $region48
      $region47: #{relative_mae_metric.1} parent=27 // pred_region
        %p250 = scmp.lt.s32.totalorder %s17, 0
        %s251 = scalar_select %p250, %s17, 0
        %s252 = scalar_lea.vmem %s2, %s251
      $region48: #{relative_mae_metric.1} parent=27 // pred_fallthru
        _
    $region28: #{relative_mae_metric.1} parent=5 // pred_fallthru
      _
    %p253 = scmp.le.s32.totalorder 2, %s8
    // Predicated region
    $region49: #{relative_mae_metric.1} parent=5 // pred_check
      %p254 = pneg %p253
    $region50: #{relative_mae_metric.1} parent=5 // pred_check_branch
      %256 = sbr.rel (%p254) target = $region52
    $region51: #{relative_mae_metric.1} parent=5 // pred_region
      %s257 = ssub.s32 %s8, 2
    $region52: #{relative_mae_metric.1} parent=5 // pred_fallthru
      _
  $region6: #{relative_mae_metric.1} parent=0 // loop_footer
    %s12 = sadd.s32 1, %s8
  $region7: #{relative_mae_metric.1} parent=0 // loop_footer_branch
    %7 = sbr.rel target = $region3
  $region8: #{relative_mae_metric.1} parent=0 // loop_exit
    _

</llo_original>
